<compile_context>
chip_gen: v7x
topology: tpu7x:2x2x1
jax: 0.10.0
libtpu: 0.0.40
codegen_flags: <defaults>
</compile_context>

<pallas_src>
import jax
import jax.numpy as jnp
from jax.experimental import pallas as pl
from jax.experimental.pallas import tpu as pltpu

F_IN, F_HID, F_OUT = 4, 3, 2
LANE = 128        # batch groups of 128 on the lane axis
MAX_TS = 1024     # max sublane rows per grid step (131072 batch elems / step)

# Flat SMEM parameter layout (23 f32 scalars):
W1_OFF = 0                         # w1[k, j] ([in, out]) at W1_OFF + k*F_HID + j
B1_OFF = W1_OFF + F_IN * F_HID     # b1[j]                at B1_OFF + j
W2_OFF = B1_OFF + F_HID            # w2[k, j] ([in, out]) at W2_OFF + k*F_OUT + j
B2_OFF = W2_OFF + F_HID * F_OUT    # b2[j]                at B2_OFF + j
N_PARAMS = B2_OFF + F_OUT          # = 23


def mlp_kernel(x_ref, p_ref, o_ref):
    # x_ref: (F_IN, TS, 128) f32 -- batch on (sublane, lane): fully dense vregs.
    # p_ref: (N_PARAMS,) f32 in SMEM -- scalars splat for free as VPU operands.
    # o_ref: (F_OUT, TS, 128).
    x = x_ref[...]

    # Layer 1: Linear(4 -> 3) + ReLU, unrolled as scalar * dense-tile FMAs.
    h = []
    for j in range(F_HID):
        acc = x[0] * p_ref[W1_OFF + 0 * F_HID + j]
        for k in range(1, F_IN):
            acc = acc + x[k] * p_ref[W1_OFF + k * F_HID + j]
        h.append(jnp.maximum(acc + p_ref[B1_OFF + j], 0.0))

    # Layer 2: Linear(3 -> 2); each output row is a full-lane, unmasked store.
    for j in range(F_OUT):
        acc = h[0] * p_ref[W2_OFF + 0 * F_OUT + j]
        for k in range(1, F_HID):
            acc = acc + h[k] * p_ref[W2_OFF + k * F_OUT + j]
        o_ref[j] = (acc + p_ref[B2_OFF + j]).astype(o_ref.dtype)


def _choose_tiling(B):
    """Returns (ts, S_pad): sublane rows per grid step and padded row count."""
    S = pl.cdiv(B, LANE)               # number of 128-lane batch groups
    if S <= 8:
        return S, S                    # tiny batch: one block (overhead-dominated anyway)
    # >= 4 grid steps once there is enough work (v7x megacore + pipelining);
    # tile is a multiple of 8 sublanes, capped so blocks stay small in VMEM.
    ts = max(8, min(MAX_TS, (pl.cdiv(S, 4) // 8) * 8))
    S_pad = pl.cdiv(S, ts) * ts        # pad so the grid divides evenly
    return ts, S_pad


def net_forward(x, flat_params):
    """x: [B, 4] f32; flat_params: [N_PARAMS] f32 -> [B, 2]."""
    B = x.shape[0]
    ts, S_pad = _choose_tiling(B)
    b_pad = S_pad * LANE

    # Layout plumbing in XLA: batch -> dense (sublane, lane) tiles, features leading.
    xt = jnp.pad(x, ((0, b_pad - B), (0, 0)))          # (b_pad, 4)
    xt = xt.T.reshape(F_IN, S_pad, LANE)               # (4, S_pad, 128)

    grid = (S_pad // ts,)
    out = pl.pallas_call(
        mlp_kernel,
        out_shape=jax.ShapeDtypeStruct((F_OUT, S_pad, LANE), x.dtype),
        grid_spec=pltpu.PrefetchScalarGridSpec(
            num_scalar_prefetch=0,
            grid=grid,
            in_specs=[
                pl.BlockSpec((F_IN, ts, LANE), lambda i: (0, i, 0)),
                # All 23 weights/biases live in SMEM; read as scalars in-kernel.
                pl.BlockSpec(memory_space=pltpu.MemorySpace.SMEM),
            ],
            out_specs=pl.BlockSpec((F_OUT, ts, LANE), lambda i: (0, i, 0)),
        ),
        compiler_params=pltpu.CompilerParams(
            dimension_semantics=("parallel",),       # batch-group axis: megacore-shardable
            vmem_limit_bytes=32 * 1024 * 1024,       # plenty of headroom on all generations
        ),
    )(xt, flat_params)

    # (2, S_pad, 128) -> (b_pad, 2) -> (B, 2)
    return out.reshape(F_OUT, b_pad)[:, :B].T


def pack_params(w1, b1, w2, b2):
    """w1: [4,3] ([in,out]), b1: [3], w2: [3,2] ([in,out]), b2: [2] -> flat (23,) f32."""
    flat = jnp.concatenate(
        [w1.reshape(-1), b1.reshape(-1), w2.reshape(-1), b2.reshape(-1)]
    ).astype(jnp.float32)
    assert flat.shape == (N_PARAMS,)
    return flat


def init_params(key):
    """Deterministic init mimicking nn.Linear's uniform(-1/sqrt(fan_in), ...)."""
    k1, k2, k3, k4 = jax.random.split(key, 4)
    bound1 = 1.0 / jnp.sqrt(float(F_IN))
    w1_t = jax.random.uniform(k1, (F_HID, F_IN), jnp.float32, -bound1, bound1)
    b1 = jax.random.uniform(k2, (F_HID,), jnp.float32, -bound1, bound1)
    bound2 = 1.0 / jnp.sqrt(float(F_HID))
    w2_t = jax.random.uniform(k3, (F_OUT, F_HID), jnp.float32, -bound2, bound2)
    b2 = jax.random.uniform(k4, (F_OUT,), jnp.float32, -bound2, bound2)
    # Pre-transpose weights to [in, out] so the kernel computes x @ W + b,
    # exactly matching PyTorch's x @ W.T + b.
    return w1_t.T, b1, w2_t.T, b2


if __name__ == "__main__":
    key = jax.random.PRNGKey(0)
    kx, kp = jax.random.split(key)
    # Module's forward implies x of shape (batch=2, features=4).
    x = jax.random.normal(kx, (2, F_IN), dtype=jnp.float32)
    w1, b1, w2, b2 = init_params(kp)
    params = pack_params(w1, b1, w2, b2)

    out = jax.block_until_ready(net_forward(x, params))

    # Pure-JAX reference of the same forward pass (unpacked weights).
    ref = jnp.maximum(x @ w1 + b1[None, :], 0.0) @ w2 + b2[None, :]
    assert out.shape == (2, F_OUT)
    assert jnp.allclose(out, ref, atol=1e-5, rtol=1e-5)

    print("KERNEL_OK")
</pallas_src>

<mosaic_0001>
module attributes {stable_mosaic.version = 11 : i64} {
  func.func @mlp_kernel(%arg0: i32, %arg1: memref<4x1x128xf32, #tpu.memory_space<vmem>>, %arg2: memref<23xf32, #tpu.memory_space<smem>>, %arg3: memref<2x1x128xf32, #tpu.memory_space<vmem>>) attributes {dimension_semantics = [#tpu.dimension_semantics<parallel>], iteration_bounds = array<i64: 1>, scalar_prefetch = 0 : i64, scratch_operands = 0 : i64, tpu.core_type = #tpu.core_type<tc>, window_params = [{transform_indices = @transform_0, window_bounds = array<i64: 4, 1, 128>}, {transform_indices = @transform_1, window_bounds = array<i64: 23>}, {transform_indices = @transform_2, window_bounds = array<i64: 2, 1, 128>}]} {
    %c0 = arith.constant 0 : index
    %c0_0 = arith.constant 0 : index
    %c0_1 = arith.constant 0 : index
    %0 = vector.load %arg1[%c0, %c0_0, %c0_1] : memref<4x1x128xf32, #tpu.memory_space<vmem>>, vector<4x1x128xf32>
    %1 = vector.extract_strided_slice %0 {offsets = [0, 0, 0], sizes = [1, 1, 128], strides = [1, 1, 1]} : vector<4x1x128xf32> to vector<1x1x128xf32>
    %2 = vector.shape_cast %1 : vector<1x1x128xf32> to vector<1x128xf32>
    %c0_2 = arith.constant 0 : index
    %3 = memref.load %arg2[%c0_2] : memref<23xf32, #tpu.memory_space<smem>>
    %4 = vector.broadcast %3 : f32 to vector<1x128xf32>
    %5 = arith.mulf %2, %4 : vector<1x128xf32>
    %6 = vector.extract_strided_slice %0 {offsets = [1, 0, 0], sizes = [1, 1, 128], strides = [1, 1, 1]} : vector<4x1x128xf32> to vector<1x1x128xf32>
    %7 = vector.shape_cast %6 : vector<1x1x128xf32> to vector<1x128xf32>
    %c3 = arith.constant 3 : index
    %8 = memref.load %arg2[%c3] : memref<23xf32, #tpu.memory_space<smem>>
    %9 = vector.broadcast %8 : f32 to vector<1x128xf32>
    %10 = arith.mulf %7, %9 : vector<1x128xf32>
    %11 = arith.addf %5, %10 : vector<1x128xf32>
    %12 = vector.extract_strided_slice %0 {offsets = [2, 0, 0], sizes = [1, 1, 128], strides = [1, 1, 1]} : vector<4x1x128xf32> to vector<1x1x128xf32>
    %13 = vector.shape_cast %12 : vector<1x1x128xf32> to vector<1x128xf32>
    %c6 = arith.constant 6 : index
    %14 = memref.load %arg2[%c6] : memref<23xf32, #tpu.memory_space<smem>>
    %15 = vector.broadcast %14 : f32 to vector<1x128xf32>
    %16 = arith.mulf %13, %15 : vector<1x128xf32>
    %17 = arith.addf %11, %16 : vector<1x128xf32>
    %18 = vector.extract_strided_slice %0 {offsets = [3, 0, 0], sizes = [1, 1, 128], strides = [1, 1, 1]} : vector<4x1x128xf32> to vector<1x1x128xf32>
    %19 = vector.shape_cast %18 : vector<1x1x128xf32> to vector<1x128xf32>
    %c9 = arith.constant 9 : index
    %20 = memref.load %arg2[%c9] : memref<23xf32, #tpu.memory_space<smem>>
    %21 = vector.broadcast %20 : f32 to vector<1x128xf32>
    %22 = arith.mulf %19, %21 : vector<1x128xf32>
    %23 = arith.addf %17, %22 : vector<1x128xf32>
    %c12 = arith.constant 12 : index
    %24 = memref.load %arg2[%c12] : memref<23xf32, #tpu.memory_space<smem>>
    %25 = vector.broadcast %24 : f32 to vector<1x128xf32>
    %26 = arith.addf %23, %25 : vector<1x128xf32>
    %cst = arith.constant 0.000000e+00 : f32
    %27 = vector.broadcast %cst : f32 to vector<1x128xf32>
    %28 = arith.maximumf %26, %27 : vector<1x128xf32>
    %29 = vector.extract_strided_slice %0 {offsets = [0, 0, 0], sizes = [1, 1, 128], strides = [1, 1, 1]} : vector<4x1x128xf32> to vector<1x1x128xf32>
    %30 = vector.shape_cast %29 : vector<1x1x128xf32> to vector<1x128xf32>
    %c1 = arith.constant 1 : index
    %31 = memref.load %arg2[%c1] : memref<23xf32, #tpu.memory_space<smem>>
    %32 = vector.broadcast %31 : f32 to vector<1x128xf32>
    %33 = arith.mulf %30, %32 : vector<1x128xf32>
    %34 = vector.extract_strided_slice %0 {offsets = [1, 0, 0], sizes = [1, 1, 128], strides = [1, 1, 1]} : vector<4x1x128xf32> to vector<1x1x128xf32>
    %35 = vector.shape_cast %34 : vector<1x1x128xf32> to vector<1x128xf32>
    %c4 = arith.constant 4 : index
    %36 = memref.load %arg2[%c4] : memref<23xf32, #tpu.memory_space<smem>>
    %37 = vector.broadcast %36 : f32 to vector<1x128xf32>
    %38 = arith.mulf %35, %37 : vector<1x128xf32>
    %39 = arith.addf %33, %38 : vector<1x128xf32>
    %40 = vector.extract_strided_slice %0 {offsets = [2, 0, 0], sizes = [1, 1, 128], strides = [1, 1, 1]} : vector<4x1x128xf32> to vector<1x1x128xf32>
    %41 = vector.shape_cast %40 : vector<1x1x128xf32> to vector<1x128xf32>
    %c7 = arith.constant 7 : index
    %42 = memref.load %arg2[%c7] : memref<23xf32, #tpu.memory_space<smem>>
    %43 = vector.broadcast %42 : f32 to vector<1x128xf32>
    %44 = arith.mulf %41, %43 : vector<1x128xf32>
    %45 = arith.addf %39, %44 : vector<1x128xf32>
    %46 = vector.extract_strided_slice %0 {offsets = [3, 0, 0], sizes = [1, 1, 128], strides = [1, 1, 1]} : vector<4x1x128xf32> to vector<1x1x128xf32>
    %47 = vector.shape_cast %46 : vector<1x1x128xf32> to vector<1x128xf32>
    %c10 = arith.constant 10 : index
    %48 = memref.load %arg2[%c10] : memref<23xf32, #tpu.memory_space<smem>>
    %49 = vector.broadcast %48 : f32 to vector<1x128xf32>
    %50 = arith.mulf %47, %49 : vector<1x128xf32>
    %51 = arith.addf %45, %50 : vector<1x128xf32>
    %c13 = arith.constant 13 : index
    %52 = memref.load %arg2[%c13] : memref<23xf32, #tpu.memory_space<smem>>
    %53 = vector.broadcast %52 : f32 to vector<1x128xf32>
    %54 = arith.addf %51, %53 : vector<1x128xf32>
    %cst_3 = arith.constant 0.000000e+00 : f32
    %55 = vector.broadcast %cst_3 : f32 to vector<1x128xf32>
    %56 = arith.maximumf %54, %55 : vector<1x128xf32>
    %57 = vector.extract_strided_slice %0 {offsets = [0, 0, 0], sizes = [1, 1, 128], strides = [1, 1, 1]} : vector<4x1x128xf32> to vector<1x1x128xf32>
    %58 = vector.shape_cast %57 : vector<1x1x128xf32> to vector<1x128xf32>
    %c2 = arith.constant 2 : index
    %59 = memref.load %arg2[%c2] : memref<23xf32, #tpu.memory_space<smem>>
    %60 = vector.broadcast %59 : f32 to vector<1x128xf32>
    %61 = arith.mulf %58, %60 : vector<1x128xf32>
    %62 = vector.extract_strided_slice %0 {offsets = [1, 0, 0], sizes = [1, 1, 128], strides = [1, 1, 1]} : vector<4x1x128xf32> to vector<1x1x128xf32>
    %63 = vector.shape_cast %62 : vector<1x1x128xf32> to vector<1x128xf32>
    %c5 = arith.constant 5 : index
    %64 = memref.load %arg2[%c5] : memref<23xf32, #tpu.memory_space<smem>>
    %65 = vector.broadcast %64 : f32 to vector<1x128xf32>
    %66 = arith.mulf %63, %65 : vector<1x128xf32>
    %67 = arith.addf %61, %66 : vector<1x128xf32>
    %68 = vector.extract_strided_slice %0 {offsets = [2, 0, 0], sizes = [1, 1, 128], strides = [1, 1, 1]} : vector<4x1x128xf32> to vector<1x1x128xf32>
    %69 = vector.shape_cast %68 : vector<1x1x128xf32> to vector<1x128xf32>
    %c8 = arith.constant 8 : index
    %70 = memref.load %arg2[%c8] : memref<23xf32, #tpu.memory_space<smem>>
    %71 = vector.broadcast %70 : f32 to vector<1x128xf32>
    %72 = arith.mulf %69, %71 : vector<1x128xf32>
    %73 = arith.addf %67, %72 : vector<1x128xf32>
    %74 = vector.extract_strided_slice %0 {offsets = [3, 0, 0], sizes = [1, 1, 128], strides = [1, 1, 1]} : vector<4x1x128xf32> to vector<1x1x128xf32>
    %75 = vector.shape_cast %74 : vector<1x1x128xf32> to vector<1x128xf32>
    %c11 = arith.constant 11 : index
    %76 = memref.load %arg2[%c11] : memref<23xf32, #tpu.memory_space<smem>>
    %77 = vector.broadcast %76 : f32 to vector<1x128xf32>
    %78 = arith.mulf %75, %77 : vector<1x128xf32>
    %79 = arith.addf %73, %78 : vector<1x128xf32>
    %c14 = arith.constant 14 : index
    %80 = memref.load %arg2[%c14] : memref<23xf32, #tpu.memory_space<smem>>
    %81 = vector.broadcast %80 : f32 to vector<1x128xf32>
    %82 = arith.addf %79, %81 : vector<1x128xf32>
    %cst_4 = arith.constant 0.000000e+00 : f32
    %83 = vector.broadcast %cst_4 : f32 to vector<1x128xf32>
    %84 = arith.maximumf %82, %83 : vector<1x128xf32>
    %c15 = arith.constant 15 : index
    %85 = memref.load %arg2[%c15] : memref<23xf32, #tpu.memory_space<smem>>
    %86 = vector.broadcast %85 : f32 to vector<1x128xf32>
    %87 = arith.mulf %28, %86 : vector<1x128xf32>
    %c17 = arith.constant 17 : index
    %88 = memref.load %arg2[%c17] : memref<23xf32, #tpu.memory_space<smem>>
    %89 = vector.broadcast %88 : f32 to vector<1x128xf32>
    %90 = arith.mulf %56, %89 : vector<1x128xf32>
    %91 = arith.addf %87, %90 : vector<1x128xf32>
    %c19 = arith.constant 19 : index
    %92 = memref.load %arg2[%c19] : memref<23xf32, #tpu.memory_space<smem>>
    %93 = vector.broadcast %92 : f32 to vector<1x128xf32>
    %94 = arith.mulf %84, %93 : vector<1x128xf32>
    %95 = arith.addf %91, %94 : vector<1x128xf32>
    %c21 = arith.constant 21 : index
    %96 = memref.load %arg2[%c21] : memref<23xf32, #tpu.memory_space<smem>>
    %97 = vector.broadcast %96 : f32 to vector<1x128xf32>
    %98 = arith.addf %95, %97 : vector<1x128xf32>
    %c0_5 = arith.constant 0 : index
    %c0_6 = arith.constant 0 : index
    %c0_7 = arith.constant 0 : index
    %99 = vector.load %arg3[%c0_5, %c0_6, %c0_7] : memref<2x1x128xf32, #tpu.memory_space<vmem>>, vector<1x1x128xf32>
    %100 = vector.shape_cast %99 : vector<1x1x128xf32> to vector<1x128xf32>
    %101 = vector.shape_cast %98 : vector<1x128xf32> to vector<1x1x128xf32>
    tpu.vector_store %arg3[%c0_5, %c0_6, %c0_7], %101 {strides = array<i32>} : memref<2x1x128xf32, #tpu.memory_space<vmem>>, vector<1x1x128xf32>,
    %c16 = arith.constant 16 : index
    %102 = memref.load %arg2[%c16] : memref<23xf32, #tpu.memory_space<smem>>
    %103 = vector.broadcast %102 : f32 to vector<1x128xf32>
    %104 = arith.mulf %28, %103 : vector<1x128xf32>
    %c18 = arith.constant 18 : index
    %105 = memref.load %arg2[%c18] : memref<23xf32, #tpu.memory_space<smem>>
    %106 = vector.broadcast %105 : f32 to vector<1x128xf32>
    %107 = arith.mulf %56, %106 : vector<1x128xf32>
    %108 = arith.addf %104, %107 : vector<1x128xf32>
    %c20 = arith.constant 20 : index
    %109 = memref.load %arg2[%c20] : memref<23xf32, #tpu.memory_space<smem>>
    %110 = vector.broadcast %109 : f32 to vector<1x128xf32>
    %111 = arith.mulf %84, %110 : vector<1x128xf32>
    %112 = arith.addf %108, %111 : vector<1x128xf32>
    %c22 = arith.constant 22 : index
    %113 = memref.load %arg2[%c22] : memref<23xf32, #tpu.memory_space<smem>>
    %114 = vector.broadcast %113 : f32 to vector<1x128xf32>
    %115 = arith.addf %112, %114 : vector<1x128xf32>
    %c1_8 = arith.constant 1 : index
    %c0_9 = arith.constant 0 : index
    %c0_10 = arith.constant 0 : index
    %116 = vector.load %arg3[%c1_8, %c0_9, %c0_10] : memref<2x1x128xf32, #tpu.memory_space<vmem>>, vector<1x1x128xf32>
    %117 = vector.shape_cast %116 : vector<1x1x128xf32> to vector<1x128xf32>
    %118 = vector.shape_cast %115 : vector<1x128xf32> to vector<1x1x128xf32>
    tpu.vector_store %arg3[%c1_8, %c0_9, %c0_10], %118 {strides = array<i32>} : memref<2x1x128xf32, #tpu.memory_space<vmem>>, vector<1x1x128xf32>,
    return
  }
  func.func @transform_0(%arg0: i32) -> (i32, i32, i32) {
    %c0_i32 = arith.constant 0 : i32
    %c0_i32_0 = arith.constant 0 : i32
    %c0_i32_1 = arith.constant 0 : i32
    return %c0_i32, %arg0, %c0_i32_0 : i32, i32, i32
  }
  func.func @transform_1(%arg0: i32) -> i32 {
    %c0_i32 = arith.constant 0 : i32
    %c0_i32_0 = arith.constant 0 : i32
    return %c0_i32 : i32
  }
  func.func @transform_2(%arg0: i32) -> (i32, i32, i32) {
    %c0_i32 = arith.constant 0 : i32
    %c0_i32_0 = arith.constant 0 : i32
    %c0_i32_1 = arith.constant 0 : i32
    return %c0_i32, %arg0, %c0_i32_0 : i32, i32, i32
  }
}

</mosaic_0001>

<llo_original>
// kernel: tpu_custom_call.1
$region0: #{tpu_custom_call.1}
  #allocation0 [shape = 'u32[]', space=smem, size = 0x4, offset = 0x4, fixed_abs, tag = 'smem constant byte address 0x4 - core index']
  #allocation1 [shape = 'u32[144,128]{1,0:T(1,128)}', space=vmem, size = 0x12000, scoped, tag = 'internal scratch']
  %s0 = inlined_call_operand.hbm [shape: f32[4,1,128], index: 0, kind: input, shape index: {}]
  %s1 = inlined_call_operand.vmem [shape: f32[23], index: 1, kind: input, shape index: {}]
  %s2 = inlined_call_operand.hbm [shape: f32[2,1,128], index: 2, kind: output, shape index: {}]
  %s3 = sld [smem:[#allocation0]]
  $region26: #{tpu_custom_call.1} parent=0
    _
  %s5 = ssub.s32 1, %s3
  %s6 = scalar_select 0, %s5, %s3
  $region1: #{tpu_custom_call.1} parent=0
    #allocation2 [shape = 'u8[2048]{0}', space=vmem, size = 0x800, scoped, tag = 'input window, operand 0, single buffered']
    #allocation3 [shape = 's32[1]{0}', space=sflag, size = 0x4, scoped, tag = 'scoped memory for tpu_custom_call.1']
    #allocation4 [shape = 's32[1]{0}', space=sflag, size = 0x4, scoped, tag = 'scoped memory for tpu_custom_call.1']
    #allocation5 [shape = 's32[1]{0}', space=sflag, size = 0x4, scoped, tag = 'scoped memory for tpu_custom_call.1']
    #allocation6 [shape = 'u8[512]{0}', space=smem, size = 0x200, scoped, tag = 'input window, operand 1, single buffered']
    #allocation7 [shape = 'u8[1024]{0}', space=vmem, size = 0x400, scoped, tag = 'output window, operand 0, single buffered']
    %7 = vsyncpa [#allocation3], 0
    %8 = vsyncpa [#allocation5], 0
    %9 = vsyncpa [#allocation4], 0
    // Predicated region
    $region2: #{tpu_custom_call.1} parent=1 // pred_check
      _
    $region3: #{tpu_custom_call.1} parent=1 // pred_check_branch
      %11 = sbr.rel (0) target = $region5
    $region4: #{tpu_custom_call.1} parent=1 // pred_region
      %s13 = ssub.s32 64, 64
      %14 = vsyncadd [#allocation3], %s13
      %s15 = sshll.u32 [#allocation2], 4
      %s16 = int_to_ptr.vmem [resolvable:$true] %s15
      %21 = dma.hbm_to_vmem [thread:$0]  %s0, 64, %s16, [#allocation3], 16, 16, 1
    $region5: #{tpu_custom_call.1} parent=1 // pred_fallthru
      _
    // Predicated region
    $region6: #{tpu_custom_call.1} parent=1 // pred_check
      _
    $region7: #{tpu_custom_call.1} parent=1 // pred_check_branch
      %23 = sbr.rel (0) target = $region9
    $region8: #{tpu_custom_call.1} parent=1 // pred_region
      %s25 = ssub.s32 16, 16
      %26 = vsyncadd [#allocation5], %s25
      %s28 = sshll.u32 %s1, 4
      %s29 = int_to_ptr.vmem [resolvable:$true] %s28
      %31 = dma.vmem_to_smem %s29, 16, [#allocation6], [#allocation5]
    $region9: #{tpu_custom_call.1} parent=1 // pred_fallthru
      _
    // Predicated region
    $region10: #{tpu_custom_call.1} parent=1 // pred_check
      _
    $region11: #{tpu_custom_call.1} parent=1 // pred_check_branch
      %33 = sbr.rel (0) target = $region13
    $region12: #{tpu_custom_call.1} parent=1 // pred_region
      %34 = dma.done [#allocation3], 64
    $region13: #{tpu_custom_call.1} parent=1 // pred_fallthru
      _
    // Predicated region
    $region14: #{tpu_custom_call.1} parent=1 // pred_check
      _
    $region15: #{tpu_custom_call.1} parent=1 // pred_check_branch
      %36 = sbr.rel (0) target = $region17
    $region16: #{tpu_custom_call.1} parent=1 // pred_region
      %37 = dma.done [#allocation5], 16
    $region17: #{tpu_custom_call.1} parent=1 // pred_fallthru
      _
    %38 = sfence
    %v39 = vld [vmem:[#allocation2] sm:$0x1]
    %v40 = vld [vmem:[#allocation2 + $0x1] sm:$0x1]
    %v41 = vld [vmem:[#allocation2 + $0x2] sm:$0x1]
    %v42 = vld [vmem:[#allocation2 + $0x3] sm:$0x1]
    %s43 = sld [smem:[#allocation6]]
    %v44 = vstv %s43
    %v45 = vmul.f32 %v39, %v44
    %s46 = sld [smem:[#allocation6 + $0x3]]
    %v47 = vstv %s46
    %v48 = vmul.f32 %v40, %v47
    %v49 = vadd.f32 %v45, %v48
    %s50 = sld [smem:[#allocation6 + $0x6]]
    %v51 = vstv %s50
    %v52 = vmul.f32 %v41, %v51
    %v53 = vadd.f32 %v49, %v52
    %s54 = sld [smem:[#allocation6 + $0x9]]
    %v55 = vstv %s54
    %v56 = vmul.f32 %v42, %v55
    %v57 = vadd.f32 %v53, %v56
    %s58 = sld [smem:[#allocation6 + $0xc]]
    %v59 = vstv %s58
    %v60 = vadd.f32 %v57, %v59
    %v61 = vmax.f32 %v60, 0.0
    %s62 = sld [smem:[#allocation6 + $0x1]]
    %v63 = vstv %s62
    %v64 = vmul.f32 %v39, %v63
    %s65 = sld [smem:[#allocation6 + $0x4]]
    %v66 = vstv %s65
    %v67 = vmul.f32 %v40, %v66
    %v68 = vadd.f32 %v64, %v67
    %s69 = sld [smem:[#allocation6 + $0x7]]
    %v70 = vstv %s69
    %v71 = vmul.f32 %v41, %v70
    %v72 = vadd.f32 %v68, %v71
    %s73 = sld [smem:[#allocation6 + $0xa]]
    %v74 = vstv %s73
    %v75 = vmul.f32 %v42, %v74
    %v76 = vadd.f32 %v72, %v75
    %s77 = sld [smem:[#allocation6 + $0xd]]
    %v78 = vstv %s77
    %v79 = vadd.f32 %v76, %v78
    %v80 = vmax.f32 %v79, 0.0
    %s81 = sld [smem:[#allocation6 + $0x2]]
    %v82 = vstv %s81
    %v83 = vmul.f32 %v39, %v82
    %s84 = sld [smem:[#allocation6 + $0x5]]
    %v85 = vstv %s84
    %v86 = vmul.f32 %v40, %v85
    %v87 = vadd.f32 %v83, %v86
    %s88 = sld [smem:[#allocation6 + $0x8]]
    %v89 = vstv %s88
    %v90 = vmul.f32 %v41, %v89
    %v91 = vadd.f32 %v87, %v90
    %s92 = sld [smem:[#allocation6 + $0xb]]
    %v93 = vstv %s92
    %v94 = vmul.f32 %v42, %v93
    %v95 = vadd.f32 %v91, %v94
    %s96 = sld [smem:[#allocation6 + $0xe]]
    %v97 = vstv %s96
    %v98 = vadd.f32 %v95, %v97
    %v99 = vmax.f32 %v98, 0.0
    %s100 = sld [smem:[#allocation6 + $0xf]]
    %v101 = vstv %s100
    %v102 = vmul.f32 %v61, %v101
    %s103 = sld [smem:[#allocation6 + $0x11]]
    %v104 = vstv %s103
    %v105 = vmul.f32 %v80, %v104
    %v106 = vadd.f32 %v102, %v105
    %s107 = sld [smem:[#allocation6 + $0x13]]
    %v108 = vstv %s107
    %v109 = vmul.f32 %v99, %v108
    %v110 = vadd.f32 %v106, %v109
    %s111 = sld [smem:[#allocation6 + $0x15]]
    %v112 = vstv %s111
    %v113 = vadd.f32 %v110, %v112
    %114 = vst [vmem:[#allocation7] sm:$0x1] %v113
    %s115 = sld [smem:[#allocation6 + $0x10]]
    %v116 = vstv %s115
    %v117 = vmul.f32 %v61, %v116
    %s118 = sld [smem:[#allocation6 + $0x12]]
    %v119 = vstv %s118
    %v120 = vmul.f32 %v80, %v119
    %v121 = vadd.f32 %v117, %v120
    %s122 = sld [smem:[#allocation6 + $0x14]]
    %v123 = vstv %s122
    %v124 = vmul.f32 %v99, %v123
    %v125 = vadd.f32 %v121, %v124
    %s126 = sld [smem:[#allocation6 + $0x16]]
    %v127 = vstv %s126
    %v128 = vadd.f32 %v125, %v127
    %s129 = scalar_lea.vmem [#allocation7], 1
    %130 = vst [vmem:[%s129] sm:$0x1] %v128
    // Predicated region
    $region18: #{tpu_custom_call.1} parent=1 // pred_check
      _
    $region19: #{tpu_custom_call.1} parent=1 // pred_check_branch
      %132 = sbr.rel (0) target = $region21
    $region20: #{tpu_custom_call.1} parent=1 // pred_region
      %s134 = ssub.s32 32, 32
      %135 = vsyncadd [#allocation4], %s134
      %s136 = sshll.u32 [#allocation7], 4
      %s137 = int_to_ptr.vmem [resolvable:$true] %s136
      %142 = dma.vmem_to_hbm [thread:$0]  %s137, 32, %s2, [#allocation4], 16, 16, 1
    $region21: #{tpu_custom_call.1} parent=1 // pred_fallthru
      _
    // Predicated region
    $region22: #{tpu_custom_call.1} parent=1 // pred_check
      _
    $region23: #{tpu_custom_call.1} parent=1 // pred_check_branch
      %144 = sbr.rel (0) target = $region25
    $region24: #{tpu_custom_call.1} parent=1 // pred_region
      %145 = dma.done [#allocation4], 32
    $region25: #{tpu_custom_call.1} parent=1 // pred_fallthru
      _
    %146 = vsyncpa [#allocation3], 1
    %147 = vsyncpa [#allocation4], 1
    %148 = vsyncpa [#allocation5], 1

</llo_original>
